<compile_context>
chip_gen: v7x
topology: tpu7x:2x2x1
jax: 0.10.0
libtpu: 0.0.40
codegen_flags: <defaults>
</compile_context>

<pallas_src>
import functools

import jax
import jax.numpy as jnp
from jax.experimental import pallas as pl
from jax.experimental.pallas import tpu as pltpu

BETA = 0.6  # self.beta in the module


def _round_up(v, m):
    return (v + m - 1) // m * m


def _odefunc_node_kernel(tile_is_full, adj_ref, m_ref, x_ref, x0_ref, o_ref):
    """One (batch, node-tile) grid step.

    adj_ref: (tile_n, n_pad)  adjacency rows, pre-scaled by sigmoid(alpha)/2
    m_ref  : (tc, tc)         fused time-mix + feature-transform - 3I operator
    x_ref  : (n_pad, tc)      full node axis (needed for the spatial contraction)
    x0_ref : (tile_n, tc)     ODE initial state, this node tile
    o_ref  : (tile_n, tc)
    """
    x_all = x_ref[...]                                   # compute dtype, no f32 copy
    if tile_is_full:
        x_tile = x_all                                   # avoid a duplicate load/slice
    else:
        tn = o_ref.shape[0]
        align = 128 if tn % 128 == 0 else 8
        row0 = pl.multiple_of(pl.program_id(1) * tn, align)
        x_tile = x_ref[pl.ds(row0, tn), :]

    # spatial term: (sigmoid(alpha)/2 * adj) @ x for this node tile (MXU, f32 acc).
    spatial = jnp.dot(adj_ref[...], x_all, preferred_element_type=jnp.float32)
    # time-mix + feature transform - 3*x, folded into one lane-dense matmul (MXU).
    mix = jnp.dot(x_tile, m_ref[...], preferred_element_type=jnp.float32)

    o_ref[...] = (spatial + mix + x0_ref[...]).astype(o_ref.dtype)


def precompute_operators(alpha, d, w, tw, adj, *, beta=BETA, dtype=jnp.bfloat16):
    """Batch-invariant parameter path.

    Call ONCE per ODE solve and pass the result via `operators=` so the dense
    (T*C, T*C) operator is not rebuilt on every RHS evaluation.
    """
    f32 = jnp.float32
    c = w.shape[0]
    t = tw.shape[0]

    a = (jax.nn.sigmoid(alpha.astype(f32)) * 0.5).reshape(-1, 1)          # (N, 1)
    d_cl = jnp.clip(d.astype(f32), 0.0, 1.0)
    w_f = w.astype(f32)
    w1 = (w_f * d_cl) @ w_f.T
    w_eff = (1.0 + beta) * w1 - beta * ((w1 @ w1.T) @ w1)                 # (C, C)

    m_time = jnp.kron(tw.astype(f32).T, jnp.eye(c, dtype=f32))            # x_flat @ . == time-mix
    m_feat = jnp.kron(jnp.eye(t, dtype=f32), w_eff)                       # x_flat @ . == x @ w_eff
    m_op = m_time + m_feat - 3.0 * jnp.eye(t * c, dtype=f32)              # fold the 3x subtraction

    adj_scaled = a * adj.astype(f32)                                      # fold sigmoid(alpha)/2
    return adj_scaled.astype(dtype), m_op.astype(dtype)


def odefunc_node_forward(x, x0, alpha, d, w, tw, adj, *, beta=BETA, tile_n=None,
                         compute_dtype=jnp.bfloat16, operators=None):
    """Pallas implementation of ODEFunc_node.forward (the ODE time arg is unused)."""
    b, n, t, c = x.shape
    tc = t * c

    if operators is None:
        operators = precompute_operators(alpha, d, w, tw, adj, beta=beta, dtype=compute_dtype)
    adj_scaled, m_op = operators
    adj_scaled = adj_scaled.astype(compute_dtype)
    m_op = m_op.astype(compute_dtype)

    # ---- node tiling: tile_n multiple of 8 (validates the multiple_of hint),
    #      node axis zero-padded so real graph sizes keep >1 parallel grid step.
    if tile_n is None:
        tile_n = 256 if n > 256 else _round_up(n, 8)
    tile_n = max(8, _round_up(tile_n, 8))
    n_pad = _round_up(n, tile_n)
    jgrid = n_pad // tile_n

    x_flat = x.reshape(b, n, tc).astype(compute_dtype)
    x0_flat = x0.reshape(b, n, tc).astype(compute_dtype)
    if n_pad != n:
        pad = n_pad - n
        x_flat = jnp.pad(x_flat, ((0, 0), (0, pad), (0, 0)))       # zero rows are inert
        x0_flat = jnp.pad(x0_flat, ((0, 0), (0, pad), (0, 0)))
        adj_scaled = jnp.pad(adj_scaled, ((0, pad), (0, pad)))

    # ---- VMEM budget derived from the actual buffers (not hard-coded). -------
    cd_bytes = jnp.dtype(compute_dtype).itemsize
    out_bytes = jnp.dtype(x.dtype).itemsize
    vmem_need = (
        2 * tile_n * n_pad * cd_bytes        # adj tile (double-buffered)
        + 1 * tc * tc * cd_bytes             # fused operator (single-buffered)
        + 2 * n_pad * tc * cd_bytes          # full-node x slab (double-buffered)
        + 2 * tile_n * tc * cd_bytes         # x0 tile
        + 2 * tile_n * tc * out_bytes        # out tile
        + 3 * tile_n * tc * 4                # f32 intermediates (spatial / mix / sum)
    )
    vmem_limit = max(32 << 20, min(int(1.25 * vmem_need) + (8 << 20), 64 << 20))

    kernel = functools.partial(_odefunc_node_kernel, jgrid == 1)

    grid_spec = pltpu.PrefetchScalarGridSpec(
        num_scalar_prefetch=0,
        grid=(b, jgrid),
        in_specs=[
            # adjacency rows of this node tile (alpha already folded in)
            pl.BlockSpec((tile_n, n_pad), lambda i, j: (j, 0)),
            # grid-constant fused (T*C, T*C) operator: single-buffer it (VMEM saver)
            pl.BlockSpec((tc, tc), lambda i, j: (0, 0), pipeline_mode=pl.Buffered(1)),
            # x, full node axis (changes only with the batch axis)
            pl.BlockSpec((pl.Squeezed(), n_pad, tc), lambda i, j: (i, 0, 0)),
            # x0 tile
            pl.BlockSpec((pl.Squeezed(), tile_n, tc), lambda i, j: (i, j, 0)),
        ],
        out_specs=pl.BlockSpec((pl.Squeezed(), tile_n, tc), lambda i, j: (i, j, 0)),
    )

    out_flat = pl.pallas_call(
        kernel,
        out_shape=jax.ShapeDtypeStruct((b, n_pad, tc), x.dtype),
        grid_spec=grid_spec,
        compiler_params=pltpu.CompilerParams(
            dimension_semantics=("parallel", "parallel"),
            vmem_limit_bytes=vmem_limit),
    )(adj_scaled, m_op, x_flat, x0_flat)

    if n_pad != n:
        out_flat = out_flat[:, :n, :]
    return out_flat.reshape(b, n, t, c)


def odefunc_node_reference(x, x0, alpha, d, w, tw, adj, beta=BETA):
    """Pure-JAX reference mirroring the PyTorch forward."""
    a = jax.nn.sigmoid(alpha)[None, :, None, None]
    dcl = jnp.clip(d, 0.0, 1.0)
    w1 = (w * dcl) @ w.T
    w_eff = (1.0 + beta) * w1 - beta * ((w1 @ w1.T) @ w1)
    spatial = jnp.einsum('ij,bjtc->bitc', adj, x)
    time_mix = jnp.einsum('bntc,st->bnsc', x, tw)
    xw = jnp.einsum('bntc,cm->bntm', x, w_eff)
    return a / 2.0 * spatial - x + time_mix - x + xw - x + x0


if __name__ == "__main__":
    def make_inputs(key, b, n, t, c):
        k_adj, k_x, k_x0, k_tw, k_w, k_d = jax.random.split(key, 6)
        adj = jax.random.uniform(k_adj, (n, n), dtype=jnp.float32)
        adj = adj / jnp.sum(adj, axis=1, keepdims=True)        # row-normalized graph
        x = jax.random.normal(k_x, (b, n, t, c), dtype=jnp.float32)
        x0 = jax.random.normal(k_x0, (b, n, t, c), dtype=jnp.float32)
        alpha = 0.8 * jnp.ones((n,), dtype=jnp.float32)
        w = jnp.eye(c, dtype=jnp.float32) + 0.02 * jax.random.normal(k_w, (c, c), dtype=jnp.float32)
        d = jnp.ones((c,), dtype=jnp.float32) - 0.1 * jax.random.uniform(k_d, (c,), dtype=jnp.float32)
        tw = 0.1 * jax.random.normal(k_tw, (t, t), dtype=jnp.float32)   # time_func weight
        return x, x0, alpha, d, w, tw, adj

    key = jax.random.PRNGKey(0)
    k1, k2 = jax.random.split(key)

    # --- Case 1: B=2, N=16, T=8, C=32 (single node tile) ----------------------
    x, x0, alpha, d, w, tw, adj = make_inputs(k1, 2, 16, 8, 32)
    ref = odefunc_node_reference(x, x0, alpha, d, w, tw, adj)

    # f32 compute path: tight check of the kernel math.
    out_f32 = jax.block_until_ready(
        odefunc_node_forward(x, x0, alpha, d, w, tw, adj, compute_dtype=jnp.float32))
    assert out_f32.shape == x.shape
    assert jnp.allclose(out_f32, ref, rtol=1e-3, atol=1e-3), "f32 path mismatch vs reference"

    # bf16 fast path (default): native MXU dtype, half the HBM traffic, f32 accumulation.
    out_bf16 = jax.block_until_ready(odefunc_node_forward(x, x0, alpha, d, w, tw, adj))
    assert out_bf16.shape == x.shape
    assert jnp.allclose(out_bf16, ref, rtol=5e-2, atol=1e-1), "bf16 path mismatch vs reference"

    # --- Case 2: non-divisible node count (padding) + tiled node axis + cached operators
    x, x0, alpha, d, w, tw, adj = make_inputs(k2, 1, 20, 8, 16)
    ref = odefunc_node_reference(x, x0, alpha, d, w, tw, adj)
    ops = precompute_operators(alpha, d, w, tw, adj, dtype=jnp.float32)   # reuse across RHS evals
    out_t = jax.block_until_ready(
        odefunc_node_forward(x, x0, alpha, d, w, tw, adj, tile_n=8,
                             compute_dtype=jnp.float32, operators=ops))
    assert out_t.shape == x.shape
    assert jnp.allclose(out_t, ref, rtol=1e-3, atol=1e-3), "tiled/padded path mismatch vs reference"

    print("KERNEL_OK")
</pallas_src>

<mosaic_0001>
module attributes {stable_mosaic.version = 11 : i64} {
  func.func @_odefunc_node_kernel(%arg0: i32, %arg1: i32, %arg2: memref<16x16xf32, #tpu.memory_space<vmem>>, %arg3: memref<256x256xf32, #tpu.memory_space<vmem>>, %arg4: memref<1x16x256xf32, #tpu.memory_space<vmem>>, %arg5: memref<1x16x256xf32, #tpu.memory_space<vmem>>, %arg6: memref<1x16x256xf32, #tpu.memory_space<vmem>>) attributes {dimension_semantics = [#tpu.dimension_semantics<parallel>, #tpu.dimension_semantics<parallel>], iteration_bounds = array<i64: 2, 1>, scalar_prefetch = 0 : i64, scratch_operands = 0 : i64, tpu.core_type = #tpu.core_type<tc>, window_params = [{transform_indices = @transform_0, window_bounds = array<i64: 16, 16>}, {pipeline_mode = #tpu.pipeline_mode<synchronous>, transform_indices = @transform_1, window_bounds = array<i64: 256, 256>}, {transform_indices = @transform_2, window_bounds = array<i64: 1, 16, 256>}, {transform_indices = @transform_3, window_bounds = array<i64: 1, 16, 256>}, {transform_indices = @transform_4, window_bounds = array<i64: 1, 16, 256>}]} {
    %c0 = arith.constant 0 : index
    %c0_0 = arith.constant 0 : index
    %c0_1 = arith.constant 0 : index
    %0 = vector.load %arg4[%c0, %c0_0, %c0_1] : memref<1x16x256xf32, #tpu.memory_space<vmem>>, vector<1x16x256xf32>
    %1 = vector.shape_cast %0 : vector<1x16x256xf32> to vector<16x256xf32>
    %c0_2 = arith.constant 0 : index
    %c0_3 = arith.constant 0 : index
    %2 = vector.load %arg2[%c0_2, %c0_3] : memref<16x16xf32, #tpu.memory_space<vmem>>, vector<16x16xf32>
    %cst = arith.constant dense<0.000000e+00> : vector<16x256xf32>
    %3 = tpu.matmul %2, %1, %cst {dimension_numbers = #tpu.dot_dimension_numbers<[1], [0], [0], [1], [0, 0, 1, 1], [], []>} : vector<16x16xf32>, vector<16x256xf32>, vector<16x256xf32> -> vector<16x256xf32>
    %c0_4 = arith.constant 0 : index
    %c0_5 = arith.constant 0 : index
    %4 = vector.load %arg3[%c0_4, %c0_5] : memref<256x256xf32, #tpu.memory_space<vmem>>, vector<256x256xf32>
    %cst_6 = arith.constant dense<0.000000e+00> : vector<16x256xf32>
    %5 = tpu.matmul %1, %4, %cst_6 {dimension_numbers = #tpu.dot_dimension_numbers<[1], [0], [0], [1], [0, 0, 1, 1], [], []>} : vector<16x256xf32>, vector<256x256xf32>, vector<16x256xf32> -> vector<16x256xf32>
    %6 = arith.addf %3, %5 : vector<16x256xf32>
    %c0_7 = arith.constant 0 : index
    %c0_8 = arith.constant 0 : index
    %c0_9 = arith.constant 0 : index
    %7 = vector.load %arg5[%c0_7, %c0_8, %c0_9] : memref<1x16x256xf32, #tpu.memory_space<vmem>>, vector<1x16x256xf32>
    %8 = vector.shape_cast %7 : vector<1x16x256xf32> to vector<16x256xf32>
    %9 = arith.addf %6, %8 : vector<16x256xf32>
    %c0_10 = arith.constant 0 : index
    %c0_11 = arith.constant 0 : index
    %c0_12 = arith.constant 0 : index
    %10 = vector.load %arg6[%c0_10, %c0_11, %c0_12] : memref<1x16x256xf32, #tpu.memory_space<vmem>>, vector<1x16x256xf32>
    %11 = vector.shape_cast %10 : vector<1x16x256xf32> to vector<16x256xf32>
    %12 = vector.shape_cast %9 : vector<16x256xf32> to vector<1x16x256xf32>
    tpu.vector_store %arg6[%c0_10, %c0_11, %c0_12], %12 {strides = array<i32>} : memref<1x16x256xf32, #tpu.memory_space<vmem>>, vector<1x16x256xf32>,
    return
  }
  func.func @transform_0(%arg0: i32, %arg1: i32) -> (i32, i32) {
    %c0_i32 = arith.constant 0 : i32
    %c0_i32_0 = arith.constant 0 : i32
    return %arg1, %c0_i32 : i32, i32
  }
  func.func @transform_1(%arg0: i32, %arg1: i32) -> (i32, i32) {
    %c0_i32 = arith.constant 0 : i32
    %c0_i32_0 = arith.constant 0 : i32
    %c0_i32_1 = arith.constant 0 : i32
    return %c0_i32, %c0_i32_0 : i32, i32
  }
  func.func @transform_2(%arg0: i32, %arg1: i32) -> (i32, i32, i32) {
    %c0_i32 = arith.constant 0 : i32
    %c0_i32_0 = arith.constant 0 : i32
    %c0_i32_1 = arith.constant 0 : i32
    return %arg0, %c0_i32, %c0_i32_0 : i32, i32, i32
  }
  func.func @transform_3(%arg0: i32, %arg1: i32) -> (i32, i32, i32) {
    %c0_i32 = arith.constant 0 : i32
    %c0_i32_0 = arith.constant 0 : i32
    return %arg0, %arg1, %c0_i32 : i32, i32, i32
  }
  func.func @transform_4(%arg0: i32, %arg1: i32) -> (i32, i32, i32) {
    %c0_i32 = arith.constant 0 : i32
    %c0_i32_0 = arith.constant 0 : i32
    return %arg0, %arg1, %c0_i32 : i32, i32, i32
  }
}

</mosaic_0001>

<llo_original>
// kernel: tpu_custom_call.1
$region0: #{tpu_custom_call.1}
  #allocation0 [shape = 'u32[]', space=smem, size = 0x4, offset = 0x4, fixed_abs, tag = 'smem constant byte address 0x4 - core index']
  #allocation1 [shape = 'u32[144,128]{1,0:T(1,128)}', space=vmem, size = 0x12000, scoped, tag = 'internal scratch']
  %s0 = inlined_call_operand.hbm [shape: f32[16,16], index: 0, kind: input, shape index: {}]
  %s1 = inlined_call_operand.hbm [shape: f32[256,256], index: 1, kind: input, shape index: {}]
  %s2 = inlined_call_operand.hbm [shape: f32[2,16,256], index: 2, kind: input, shape index: {}]
  %s3 = inlined_call_operand.hbm [shape: f32[2,16,256], index: 3, kind: input, shape index: {}]
  %s4 = inlined_call_operand.hbm [shape: f32[2,16,256], index: 4, kind: output, shape index: {}]
  %s5 = sld [smem:[#allocation0]]
  $region65: #{tpu_custom_call.1} parent=0
    _
  %s7 = ssub.s32 1, %s5
  %s8 = scalar_select 0, %s7, %s5
  $region1: #{tpu_custom_call.1} parent=0
    #allocation2 [shape = 'u8[8192]{0}', space=vmem, size = 0x2000, scoped, tag = 'input window, operand 0, single buffered']
    #allocation3 [shape = 's32[2]{0}', space=sflag, size = 0x8, scoped, tag = 'scoped memory for tpu_custom_call.1']
    #allocation4 [shape = 's32[2]{0}', space=sflag, size = 0x8, scoped, tag = 'scoped memory for tpu_custom_call.1']
    #allocation5 [shape = 'u8[262144]{0}', space=vmem, size = 0x40000, scoped, tag = 'input window, operand 1, single buffered']
    #allocation6 [shape = 's32[1]{0}', space=sflag, size = 0x4, scoped, tag = 'scoped memory for tpu_custom_call.1']
    #allocation7 [shape = 'u8[32768]{0}', space=vmem, size = 0x8000, scoped, tag = 'input window, operand 2']
    #allocation8 [shape = 'u8[32768]{0}', space=vmem, size = 0x8000, scoped, tag = 'input window, operand 3']
    #allocation9 [shape = 'u8[32768]{0}', space=vmem, size = 0x8000, scoped, tag = 'output window, operand 0']
    %9 = vsyncpa [#allocation3], 0
    %10 = vsyncpa [#allocation6], 0
    %11 = vsyncpa [#allocation4], 0
    %s12 = scalar_lea.sflag [#allocation4], 1
    %13 = vsyncpa %s12, 0
    loop: start=0, step=1, limit=4
    $region2: #{tpu_custom_call.1} parent=1 // loop_pre_header
      _
    $region3: #{tpu_custom_call.1} parent=1 // loop_header
      %s15 = sphi 0, %s19
      %p16 = scmp.ge.s32.totalorder %s15, 4
      %s22 = sphi 0, %s34
      %s23 = sphi 0, %s30
      %s24 = sphi 0, %s22
      %s25 = sphi 0, %s23
      %s26 = sphi 0, %s24
      %s27 = sphi 0, %s25
      %s37 = sphi 0, %s39
      %s40 = sphi 0, %s37
      %s41 = sphi 0, %s40
      %s57 = sphi 0, %s41
      %s61 = sphi 0, %s61
      %s63 = sphi 0, %s61
      %s64 = sphi 0, %s63
      %s78 = sphi 0, %s64
      %s84 = sphi 0, %s86
      %s87 = sphi 0, %s84
      %s88 = sphi 0, %s87
      %s104 = sphi 0, %s88
      %s112 = sphi 0, %s114
      %s115 = sphi 0, %s112
      %s116 = sphi 0, %s115
      %s132 = sphi 0, %s116
      %s140 = sphi 0, %s142
      %s143 = sphi 0, %s140
      %s144 = sphi 0, %s143
      %s160 = sphi 0, %s144
    $region4: #{tpu_custom_call.1} parent=1 // loop_header_branch
      %18 = sbr.rel (%p16) target = $region8
    $region5: #{tpu_custom_call.1} parent=1 // loop_body
      %s20 = ssub.s32 %s15, 1
      %s21 = ssub.s32 %s15, 2
      %s28 = sadd.s32 1, %s23
      %p29 = scmp.ge.s32.totalorder %s28, 1
      %s30 = scalar_select %p29, 0, %s28
      %s31 = sadd.s32 1, %s22
      %s32 = scalar_select %p29, %s31, %s22
      %p33 = scmp.ge.s32.totalorder %s32, 2
      %s34 = scalar_select %p33, 0, %s32
      %s35 = ssub.s32 %s23, %s30
      %p36 = scmp.eq.s32.totalorder %s35, 0
      %s38 = sadd.s32 %s37, 1
      %s39 = scalar_select %p36, %s37, %s38
      %p42 = pneg %p36
      %p43 = scmp.eq.s32.totalorder %s15, 1
      %p44 = por %p42, %p43
      %p45 = scmp.ne.s32.totalorder %s37, %s40
      %p46 = scmp.eq.s32.totalorder %s15, 0
      %p47 = por %p45, %p46
      %p48 = scmp.ne.s32.totalorder %s37, %s40
      %p49 = scmp.eq.s32.totalorder %s20, 1
      %p50 = por %p48, %p49
      %p51 = scmp.ne.s32.totalorder %s40, %s41
      %p52 = scmp.eq.s32.totalorder %s20, 0
      %p53 = por %p51, %p52
      %p54 = scmp.ne.s32.totalorder %s40, %s41
      %p55 = scmp.eq.s32.totalorder %s21, 1
      %p56 = por %p54, %p55
      %p58 = scmp.ne.s32.totalorder %s41, %s57
      %p59 = scmp.eq.s32.totalorder %s21, 0
      %p60 = por %p58, %p59
      %s62 = sadd.s32 %s61, 1
      %p65 = scmp.eq.s32.totalorder %s15, 1
      %p66 = scmp.ne.s32.totalorder %s61, %s63
      %p67 = scmp.eq.s32.totalorder %s15, 0
      %p68 = por %p66, %p67
      %p69 = scmp.ne.s32.totalorder %s61, %s63
      %p70 = scmp.eq.s32.totalorder %s20, 1
      %p71 = por %p69, %p70
      %p72 = scmp.ne.s32.totalorder %s63, %s64
      %p73 = scmp.eq.s32.totalorder %s20, 0
      %p74 = por %p72, %p73
      %p75 = scmp.ne.s32.totalorder %s63, %s64
      %p76 = scmp.eq.s32.totalorder %s21, 1
      %p77 = por %p75, %p76
      %p79 = scmp.ne.s32.totalorder %s64, %s78
      %p80 = scmp.eq.s32.totalorder %s21, 0
      %p81 = por %p79, %p80
      %s82 = ssub.s32 %s22, %s34
      %p83 = scmp.eq.s32.totalorder %s82, 0
      %s85 = sadd.s32 %s84, 1
      %s86 = scalar_select %p83, %s84, %s85
      %p89 = pneg %p83
      %p90 = scmp.eq.s32.totalorder %s15, 1
      %p91 = por %p89, %p90
      %p92 = scmp.ne.s32.totalorder %s84, %s87
      %p93 = scmp.eq.s32.totalorder %s15, 0
      %p94 = por %p92, %p93
      %p95 = scmp.ne.s32.totalorder %s84, %s87
      %p96 = scmp.eq.s32.totalorder %s20, 1
      %p97 = por %p95, %p96
      %p98 = scmp.ne.s32.totalorder %s87, %s88
      %p99 = scmp.eq.s32.totalorder %s20, 0
      %p100 = por %p98, %p99
      %p101 = scmp.ne.s32.totalorder %s87, %s88
      %p102 = scmp.eq.s32.totalorder %s21, 1
      %p103 = por %p101, %p102
      %p105 = scmp.ne.s32.totalorder %s88, %s104
      %p106 = scmp.eq.s32.totalorder %s21, 0
      %p107 = por %p105, %p106
      %s108 = ssub.s32 %s22, %s34
      %s109 = ssub.s32 %s23, %s30
      %s110 = sor.u32 %s108, %s109
      %p111 = scmp.eq.s32.totalorder %s110, 0
      %s113 = sadd.s32 %s112, 1
      %s114 = scalar_select %p111, %s112, %s113
      %p117 = pneg %p111
      %p118 = scmp.eq.s32.totalorder %s15, 1
      %p119 = por %p117, %p118
      %p120 = scmp.ne.s32.totalorder %s112, %s115
      %p121 = scmp.eq.s32.totalorder %s15, 0
      %p122 = por %p120, %p121
      %p123 = scmp.ne.s32.totalorder %s112, %s115
      %p124 = scmp.eq.s32.totalorder %s20, 1
      %p125 = por %p123, %p124
      %p126 = scmp.ne.s32.totalorder %s115, %s116
      %p127 = scmp.eq.s32.totalorder %s20, 0
      %p128 = por %p126, %p127
      %p129 = scmp.ne.s32.totalorder %s115, %s116
      %p130 = scmp.eq.s32.totalorder %s21, 1
      %p131 = por %p129, %p130
      %p133 = scmp.ne.s32.totalorder %s116, %s132
      %p134 = scmp.eq.s32.totalorder %s21, 0
      %p135 = por %p133, %p134
      %s136 = ssub.s32 %s22, %s34
      %s137 = ssub.s32 %s23, %s30
      %s138 = sor.u32 %s136, %s137
      %p139 = scmp.eq.s32.totalorder %s138, 0
      %s141 = sadd.s32 %s140, 1
      %s142 = scalar_select %p139, %s140, %s141
      %p145 = pneg %p139
      %p146 = scmp.eq.s32.totalorder %s15, 1
      %p147 = por %p145, %p146
      %p148 = scmp.ne.s32.totalorder %s140, %s143
      %p149 = scmp.eq.s32.totalorder %s15, 0
      %p150 = por %p148, %p149
      %p151 = scmp.ne.s32.totalorder %s140, %s143
      %p152 = scmp.eq.s32.totalorder %s20, 1
      %p153 = por %p151, %p152
      %p154 = scmp.ne.s32.totalorder %s143, %s144
      %p155 = scmp.eq.s32.totalorder %s20, 0
      %p156 = por %p154, %p155
      %p157 = scmp.ne.s32.totalorder %s143, %s144
      %p158 = scmp.eq.s32.totalorder %s21, 1
      %p159 = por %p157, %p158
      %p161 = scmp.ne.s32.totalorder %s144, %s160
      %p162 = scmp.eq.s32.totalorder %s21, 0
      %p163 = por %p161, %p162
      %p164 = scmp.le.s32.totalorder 1, %s15
      %p165 = scmp.lt.s32.totalorder %s15, 3
      %p166 = pnand %p164, %p165
      %p167 = pneg %p166
      // Predicated region
      $region9: #{tpu_custom_call.1} parent=5 // pred_check
        _
      $region10: #{tpu_custom_call.1} parent=5 // pred_check_branch
        %169 = sbr.rel (%p166) target = $region12
      $region11: #{tpu_custom_call.1} parent=5 // pred_region
        %s170 = ssub.s32 %s15, 1
        // Predicated region
        $region13: #{tpu_custom_call.1} parent=11 // pred_check
          %p171 = pneg %p53
        $region14: #{tpu_custom_call.1} parent=11 // pred_check_branch
          %173 = sbr.rel (%p171) target = $region16
        $region15: #{tpu_custom_call.1} parent=11 // pred_region
          %s174 = smul.u32 2, %s25
          %s176 = ssub.s32 256, 256
          %177 = vsyncadd [#allocation3], %s176
          %s178 = smul.addr %s174, 128
          %s179 = scalar_lea.hbm %s0, %s178
          %s180 = sshll.u32 [#allocation2], 4
          %s181 = int_to_ptr.vmem [resolvable:$true] %s180
          %186 = dma.hbm_to_vmem [thread:$0]  %s179, 256, %s181, [#allocation3], 128, 128, 8
        $region16: #{tpu_custom_call.1} parent=11 // pred_fallthru
          _
        // Predicated region
        $region17: #{tpu_custom_call.1} parent=11 // pred_check
          %p187 = pneg %p74
        $region18: #{tpu_custom_call.1} parent=11 // pred_check_branch
          %189 = sbr.rel (%p187) target = $region20
        $region19: #{tpu_custom_call.1} parent=11 // pred_region
          %s191 = ssub.s32 8192, 8192
          %192 = vsyncadd [#allocation6], %s191
          %s193 = sshll.u32 [#allocation5], 4
          %s194 = int_to_ptr.vmem [resolvable:$true] %s193
          %199 = dma.hbm_to_vmem [thread:$0]  %s1, 8192, %s194, [#allocation6], 256, 256, 16
        $region20: #{tpu_custom_call.1} parent=11 // pred_fallthru
          _
      $region12: #{tpu_custom_call.1} parent=5 // pred_fallthru
        _
      %p200 = scmp.lt.s32.totalorder %s15, 2
      // Predicated region
      $region21: #{tpu_custom_call.1} parent=5 // pred_check
        %p201 = pneg %p200
      $region22: #{tpu_custom_call.1} parent=5 // pred_check_branch
        %203 = sbr.rel (%p201) target = $region24
      $region23: #{tpu_custom_call.1} parent=5 // pred_region
        // Predicated region
        $region25: #{tpu_custom_call.1} parent=23 // pred_check
          %p204 = pneg %p94
        $region26: #{tpu_custom_call.1} parent=23 // pred_check_branch
          %206 = sbr.rel (%p204) target = $region28
        $region27: #{tpu_custom_call.1} parent=23 // pred_region
          %s207 = sand.u32 %s15, 1
          %s208 = scalar_lea.sflag [#allocation3], %s207
          %s209 = sand.u32 %s84, 1
          %s210 = smul.addr %s209, 32
          %s211 = scalar_lea.vmem [#allocation7], %s210
          %s213 = ssub.s32 512, 512
          %214 = vsyncadd %s208, %s213
          %s215 = smul.addr %s22, 4
          %s216 = smul.addr %s215, 128
          %s217 = scalar_lea.hbm %s2, %s216
          %s218 = sshll.u32 %s211, 4
          %s219 = int_to_ptr.vmem [resolvable:$true] %s218
          %224 = dma.hbm_to_vmem [thread:$0]  %s217, 512, %s219, %s208, 256, 256, 16
        $region28: #{tpu_custom_call.1} parent=23 // pred_fallthru
          _
        // Predicated region
        $region29: #{tpu_custom_call.1} parent=23 // pred_check
          %p225 = pneg %p122
        $region30: #{tpu_custom_call.1} parent=23 // pred_check_branch
          %227 = sbr.rel (%p225) target = $region32
        $region31: #{tpu_custom_call.1} parent=23 // pred_region
          %s228 = sand.u32 %s15, 1
          %s229 = scalar_lea.sflag [#allocation3], %s228
          %s230 = sand.u32 %s112, 1
          %s231 = smul.addr %s230, 32
          %s232 = scalar_lea.vmem [#allocation8], %s231
          %s233 = smul.u32 2, %s23
          %s235 = ssub.s32 512, 512
          %236 = vsyncadd %s229, %s235
          %s237 = smul.addr %s233, 2
          %s238 = smul.addr %s22, 4
          %s239 = sadd.s32 %s237, %s238
          %s240 = smul.addr %s239, 128
          %s241 = scalar_lea.hbm %s3, %s240
          %s242 = sshll.u32 %s232, 4
          %s243 = int_to_ptr.vmem [resolvable:$true] %s242
          %248 = dma.hbm_to_vmem [thread:$0]  %s241, 512, %s243, %s229, 256, 256, 16
        $region32: #{tpu_custom_call.1} parent=23 // pred_fallthru
          _
      $region24: #{tpu_custom_call.1} parent=5 // pred_fallthru
        _
      %p249 = scmp.le.s32.totalorder 1, %s15
      %p250 = scmp.lt.s32.totalorder %s15, 3
      %p251 = pnand %p249, %p250
      %p252 = pneg %p251
      // Predicated region
      $region33: #{tpu_custom_call.1} parent=5 // pred_check
        _
      $region34: #{tpu_custom_call.1} parent=5 // pred_check_branch
        %254 = sbr.rel (%p251) target = $region36
      $region35: #{tpu_custom_call.1} parent=5 // pred_region
        %s255 = ssub.s32 %s15, 1
        // Predicated region
        $region37: #{tpu_custom_call.1} parent=35 // pred_check
          %p256 = pneg %p53
        $region38: #{tpu_custom_call.1} parent=35 // pred_check_branch
          %258 = sbr.rel (%p256) target = $region40
        $region39: #{tpu_custom_call.1} parent=35 // pred_region
          %259 = dma.done [#allocation3], 256
        $region40: #{tpu_custom_call.1} parent=35 // pred_fallthru
          _
        // Predicated region
        $region41: #{tpu_custom_call.1} parent=35 // pred_check
          %p260 = pneg %p74
        $region42: #{tpu_custom_call.1} parent=35 // pred_check_branch
          %262 = sbr.rel (%p260) target = $region44
        $region43: #{tpu_custom_call.1} parent=35 // pred_region
          %263 = dma.done [#allocation6], 8192
        $region44: #{tpu_custom_call.1} parent=35 // pred_fallthru
          _
        %s264 = sand.u32 %s20, 1
        %s265 = scalar_lea.sflag [#allocation3], %s264
        %s266 = sand.u32 %s87, 1
        %s267 = smul.addr %s266, 32
        %s268 = scalar_lea.vmem [#allocation7], %s267
        // Predicated region
        $region45: #{tpu_custom_call.1} parent=35 // pred_check
          %p269 = pneg %p100
        $region46: #{tpu_custom_call.1} parent=35 // pred_check_branch
          %271 = sbr.rel (%p269) target = $region48
        $region47: #{tpu_custom_call.1} parent=35 // pred_region
          %272 = dma.done %s265, 512
        $region48: #{tpu_custom_call.1} parent=35 // pred_fallthru
          _
        %s273 = sand.u32 %s20, 1
        %s274 = scalar_lea.sflag [#allocation3], %s273
        %s275 = sand.u32 %s115, 1
        %s276 = smul.addr %s275, 32
        %s277 = scalar_lea.vmem [#allocation8], %s276
        // Predicated region
        $region49: #{tpu_custom_call.1} parent=35 // pred_check
          %p278 = pneg %p128
        $region50: #{tpu_custom_call.1} parent=35 // pred_check_branch
          %280 = sbr.rel (%p278) target = $region52
        $region51: #{tpu_custom_call.1} parent=35 // pred_region
          %281 = dma.done %s274, 512
        $region52: #{tpu_custom_call.1} parent=35 // pred_fallthru
          _
        %p282 = pneg %p53
        %p283 = pneg %p50
        %p284 = pneg %p74
        %p285 = pneg %p71
        %s286 = sand.u32 %s20, 1
        %s287 = scalar_lea.sflag [#allocation3], %s286
        %s288 = sand.u32 %s87, 1
        %s289 = smul.addr %s288, 32
        %s290 = scalar_lea.vmem [#allocation7], %s289
        %p291 = pneg %p100
        %p292 = pneg %p97
        %s293 = sand.u32 %s20, 1
        %s294 = scalar_lea.sflag [#allocation3], %s293
        %s295 = sand.u32 %s115, 1
        %s296 = smul.addr %s295, 32
        %s297 = scalar_lea.vmem [#allocation8], %s296
        %p298 = pneg %p128
        %p299 = pneg %p125
        %p300 = pneg %p156
        %p301 = pneg %p153
        %s302 = sand.u32 %s143, 1
        %s303 = scalar_lea.sflag [#allocation4], %s302
        %s304 = sand.u32 %s143, 1
        %s305 = smul.addr %s304, 32
        %s306 = scalar_lea.vmem [#allocation9], %s305
        %s307 = smul.u32 2, %s25
        %s308 = smul.u32 2, %s25
        %s309 = smul.u32 2, %s25
        %v310 = vld [vmem:[%s268] sm:$0xff]
        %v311 = vld [vmem:[%s268 + $0x8] sm:$0xff]
        %v312 = vld [vmem:[%s268 + $0x10] sm:$0xff]
        %v313 = vld [vmem:[%s268 + $0x18] sm:$0xff]
        %v314 = vld [vmem:[#allocation2] sm:$0xff]
        %v315 = vld [vmem:[#allocation2 + $0x8] sm:$0xff]
        %v316 = vld [vmem:[#allocation5] sm:$0xff]
        %v317 = vld [vmem:[#allocation5 + $0x8] sm:$0xff]
        %v318 = vld [vmem:[#allocation5 + $0x10] sm:$0xff]
        %v319 = vld [vmem:[#allocation5 + $0x18] sm:$0xff]
        %v320 = vld [vmem:[#allocation5 + $0x20] sm:$0xff]
        %v321 = vld [vmem:[#allocation5 + $0x28] sm:$0xff]
        %v322 = vld [vmem:[#allocation5 + $0x30] sm:$0xff]
        %v323 = vld [vmem:[#allocation5 + $0x38] sm:$0xff]
        %v324 = vld [vmem:[#allocation5 + $0x40] sm:$0xff]
        %v325 = vld [vmem:[#allocation5 + $0x48] sm:$0xff]
        %v326 = vld [vmem:[#allocation5 + $0x50] sm:$0xff]
        %v327 = vld [vmem:[#allocation5 + $0x58] sm:$0xff]
        %v328 = vld [vmem:[#allocation5 + $0x60] sm:$0xff]
        %v329 = vld [vmem:[#allocation5 + $0x68] sm:$0xff]
        %v330 = vld [vmem:[#allocation5 + $0x70] sm:$0xff]
        %v331 = vld [vmem:[#allocation5 + $0x78] sm:$0xff]
        %v332 = vld [vmem:[#allocation5 + $0x80] sm:$0xff]
        %v333 = vld [vmem:[#allocation5 + $0x88] sm:$0xff]
        %v334 = vld [vmem:[#allocation5 + $0x90] sm:$0xff]
        %v335 = vld [vmem:[#allocation5 + $0x98] sm:$0xff]
        %v336 = vld [vmem:[#allocation5 + $0xa0] sm:$0xff]
        %v337 = vld [vmem:[#allocation5 + $0xa8] sm:$0xff]
        %v338 = vld [vmem:[#allocation5 + $0xb0] sm:$0xff]
        %v339 = vld [vmem:[#allocation5 + $0xb8] sm:$0xff]
        %v340 = vld [vmem:[#allocation5 + $0xc0] sm:$0xff]
        %v341 = vld [vmem:[#allocation5 + $0xc8] sm:$0xff]
        %v342 = vld [vmem:[#allocation5 + $0xd0] sm:$0xff]
        %v343 = vld [vmem:[#allocation5 + $0xd8] sm:$0xff]
        %v344 = vld [vmem:[#allocation5 + $0xe0] sm:$0xff]
        %v345 = vld [vmem:[#allocation5 + $0xe8] sm:$0xff]
        %v346 = vld [vmem:[#allocation5 + $0xf0] sm:$0xff]
        %v347 = vld [vmem:[#allocation5 + $0xf8] sm:$0xff]
        %v348 = vld [vmem:[#allocation5 + $0x100] sm:$0xff]
        %v349 = vld [vmem:[#allocation5 + $0x108] sm:$0xff]
        %v350 = vld [vmem:[#allocation5 + $0x110] sm:$0xff]
        %v351 = vld [vmem:[#allocation5 + $0x118] sm:$0xff]
        %v352 = vld [vmem:[#allocation5 + $0x120] sm:$0xff]
        %v353 = vld [vmem:[#allocation5 + $0x128] sm:$0xff]
        %v354 = vld [vmem:[#allocation5 + $0x130] sm:$0xff]
        %v355 = vld [vmem:[#allocation5 + $0x138] sm:$0xff]
        %v356 = vld [vmem:[#allocation5 + $0x140] sm:$0xff]
        %v357 = vld [vmem:[#allocation5 + $0x148] sm:$0xff]
        %v358 = vld [vmem:[#allocation5 + $0x150] sm:$0xff]
        %v359 = vld [vmem:[#allocation5 + $0x158] sm:$0xff]
        %v360 = vld [vmem:[#allocation5 + $0x160] sm:$0xff]
        %v361 = vld [vmem:[#allocation5 + $0x168] sm:$0xff]
        %v362 = vld [vmem:[#allocation5 + $0x170] sm:$0xff]
        %v363 = vld [vmem:[#allocation5 + $0x178] sm:$0xff]
        %v364 = vld [vmem:[#allocation5 + $0x180] sm:$0xff]
        %v365 = vld [vmem:[#allocation5 + $0x188] sm:$0xff]
        %v366 = vld [vmem:[#allocation5 + $0x190] sm:$0xff]
        %v367 = vld [vmem:[#allocation5 + $0x198] sm:$0xff]
        %v368 = vld [vmem:[#allocation5 + $0x1a0] sm:$0xff]
        %v369 = vld [vmem:[#allocation5 + $0x1a8] sm:$0xff]
        %v370 = vld [vmem:[#allocation5 + $0x1b0] sm:$0xff]
        %v371 = vld [vmem:[#allocation5 + $0x1b8] sm:$0xff]
        %v372 = vld [vmem:[#allocation5 + $0x1c0] sm:$0xff]
        %v373 = vld [vmem:[#allocation5 + $0x1c8] sm:$0xff]
        %v374 = vld [vmem:[#allocation5 + $0x1d0] sm:$0xff]
        %v375 = vld [vmem:[#allocation5 + $0x1d8] sm:$0xff]
        %v376 = vld [vmem:[#allocation5 + $0x1e0] sm:$0xff]
        %v377 = vld [vmem:[#allocation5 + $0x1e8] sm:$0xff]
        %v378 = vld [vmem:[#allocation5 + $0x1f0] sm:$0xff]
        %v379 = vld [vmem:[#allocation5 + $0x1f8] sm:$0xff]
        %380 = vmatprep.subr.mxu0 %v317
        %381 = vmatpush1.msra.mxu0 %v316
        %382 = vmatprep.subr.mxu0 %v319
        %383 = vmatpush1.msra.mxu0 %v318
        %384 = vmatprep.subr.mxu0 %v321
        %385 = vmatpush1.msra.mxu0 %v320
        %386 = vmatprep.subr.mxu0 %v323
        %387 = vmatpush1.msra.mxu0 %v322
        %388 = vmatprep.subr.mxu0 %v325
        %389 = vmatpush1.msra.mxu0 %v324
        %390 = vmatprep.subr.mxu0 %v327
        %391 = vmatpush1.msra.mxu0 %v326
        %392 = vmatprep.subr.mxu0 %v329
        %393 = vmatpush1.msra.mxu0 %v328
        %394 = vmatprep.subr.mxu0 %v331
        %395 = vmatpush1.msra.mxu0 %v330
        %396 = vmatprep.subr.mxu0 %v333
        %397 = vmatpush1.msra.mxu0 %v332
        %398 = vmatprep.subr.mxu0 %v335
        %399 = vmatpush1.msra.mxu0 %v334
        %400 = vmatprep.subr.mxu0 %v337
        %401 = vmatpush1.msra.mxu0 %v336
        %402 = vmatprep.subr.mxu0 %v339
        %403 = vmatpush1.msra.mxu0 %v338
        %404 = vmatprep.subr.mxu0 %v341
        %405 = vmatpush1.msra.mxu0 %v340
        %406 = vmatprep.subr.mxu0 %v343
        %407 = vmatpush1.msra.mxu0 %v342
        %408 = vmatprep.subr.mxu0 %v345
        %409 = vmatpush1.msra.mxu0 %v344
        %410 = vmatprep.subr.mxu0 %v347
        %411 = vmatpush1.msra.mxu0 %v346
        %412 = vmatprep.subr.mxu0 %v349
        %413 = vmatpush1.msra.mxu0 %v348
        %414 = vmatprep.subr.mxu0 %v351
        %415 = vmatpush1.msra.mxu0 %v350
        %416 = vmatprep.subr.mxu0 %v353
        %417 = vmatpush1.msra.mxu0 %v352
        %418 = vmatprep.subr.mxu0 %v355
        %419 = vmatpush1.msra.mxu0 %v354
        %420 = vmatprep.subr.mxu0 %v357
        %421 = vmatpush1.msra.mxu0 %v356
        %422 = vmatprep.subr.mxu0 %v359
        %423 = vmatpush1.msra.mxu0 %v358
        %424 = vmatprep.subr.mxu0 %v361
        %425 = vmatpush1.msra.mxu0 %v360
        %426 = vmatprep.subr.mxu0 %v363
        %427 = vmatpush1.msra.mxu0 %v362
        %428 = vmatprep.subr.mxu0 %v365
        %429 = vmatpush1.msra.mxu0 %v364
        %430 = vmatprep.subr.mxu0 %v367
        %431 = vmatpush1.msra.mxu0 %v366
        %432 = vmatprep.subr.mxu0 %v369
        %433 = vmatpush1.msra.mxu0 %v368
        %434 = vmatprep.subr.mxu0 %v371
        %435 = vmatpush1.msra.mxu0 %v370
        %436 = vmatprep.subr.mxu0 %v373
        %437 = vmatpush1.msra.mxu0 %v372
        %438 = vmatprep.subr.mxu0 %v375
        %439 = vmatpush1.msra.mxu0 %v374
        %440 = vmatprep.subr.mxu0 %v377
        %441 = vmatpush1.msra.mxu0 %v376
        %442 = vmatprep.subr.mxu0 %v379
        %443 = vmatpush1.msra.mxu0 %v378
        %444 = vmatprep.mubr.f32.mxu0 %v311
        %445 = vmatmul.mubr.f32.gmra.mrb[0].mxu0 %v310
        %v446 = vpop.f32.mrb[0].mxu0
        %v447 = vadd.f32 0.0, %v446
        %v448 = vpop.f32.mrb[0].mxu0
        %v449 = vadd.f32 0.0, %v448
        %450 = vmatprep.mubr.f32.mxu0 %v313
        %451 = vmatmul.mubr.f32.gmra.mrb[0].mxu0 %v312
        %v452 = vpop.f32.mrb[0].mxu0
        %v453 = vadd.f32 0.0, %v452
        %v454 = vpop.f32.mrb[0].mxu0
        %v455 = vadd.f32 0.0, %v454
        %456 = vdwg.mxu0
        %vm457 = vcmask 130048
        %v459 = vsel %vm457, %v314, 0
        %v462 = vsel %vm457, %v315, 0
        %464 = vmatprep.subr.mxu0 %v311
        %465 = vmatpush1.msra.mxu0 %v310
        %466 = vmatprep.subr.mxu0 %v313
        %467 = vmatpush1.msra.mxu0 %v312
        %468 = vmatprep.subr.mxu0 0.0
        %469 = vmatpush1.msra.mxu0 0.0
        %470 = vmatprep.subr.mxu0 0.0
        %471 = vmatpush1.msra.mxu0 0.0
        %472 = vmatprep.subr.mxu0 0.0
        %473 = vmatpush1.msra.mxu0 0.0
        %474 = vmatprep.subr.mxu0 0.0
        %475 = vmatpush1.msra.mxu0 0.0
        %476 = vmatprep.subr.mxu0 0.0
        %477 = vmatpush1.msra.mxu0 0.0
        %478 = vmatprep.subr.mxu0 0.0
        %479 = vmatpush1.msra.mxu0 0.0
        %480 = vmatprep.subr.mxu0 0.0
        %481 = vmatpush1.msra.mxu0 0.0
        %482 = vmatprep.subr.mxu0 0.0
        %483 = vmatpush1.msra.mxu0 0.0
        %484 = vmatprep.subr.mxu0 0.0
        %485 = vmatpush1.msra.mxu0 0.0
        %486 = vmatprep.subr.mxu0 0.0
        %487 = vmatpush1.msra.mxu0 0.0
        %488 = vmatprep.subr.mxu0 0.0
        %489 = vmatpush1.msra.mxu0 0.0
        %490 = vmatprep.subr.mxu0 0.0
        %491 = vmatpush1.msra.mxu0 0.0
        %492 = vmatprep.subr.mxu0 0.0
        %493 = vmatpush1.msra.mxu0 0.0
        %494 = vmatprep.subr.mxu0 0.0
        %495 = vmatpush1.msra.mxu0 0.0
        %496 = vmatprep.subr.mxu0 0.0
        %497 = vmatpush1.msra.mxu0 0.0
        %498 = vmatprep.subr.mxu0 0.0
        %499 = vmatpush1.msra.mxu0 0.0
        %500 = vmatprep.subr.mxu0 0.0
        %501 = vmatpush1.msra.mxu0 0.0
        %502 = vmatprep.subr.mxu0 0.0
        %503 = vmatpush1.msra.mxu0 0.0
        %504 = vmatprep.subr.mxu0 0.0
        %505 = vmatpush1.msra.mxu0 0.0
        %506 = vmatprep.subr.mxu0 0.0
        %507 = vmatpush1.msra.mxu0 0.0
        %508 = vmatprep.subr.mxu0 0.0
        %509 = vmatpush1.msra.mxu0 0.0
        %510 = vmatprep.subr.mxu0 0.0
        %511 = vmatpush1.msra.mxu0 0.0
        %512 = vmatprep.subr.mxu0 0.0
        %513 = vmatpush1.msra.mxu0 0.0
        %514 = vmatprep.subr.mxu0 0.0
        %515 = vmatpush1.msra.mxu0 0.0
        %516 = vmatprep.subr.mxu0 0.0
        %517 = vmatpush1.msra.mxu0 0.0
        %518 = vmatprep.subr.mxu0 0.0
        %519 = vmatpush1.msra.mxu0 0.0
        %520 = vmatprep.subr.mxu0 0.0
        %521 = vmatpush1.msra.mxu0 0.0
        %522 = vmatprep.subr.mxu0 0.0
        %523 = vmatpush1.msra.mxu0 0.0
        %524 = vmatprep.subr.mxu0 0.0
        %525 = vmatpush1.msra.mxu0 0.0
        %526 = vmatprep.subr.mxu0 0.0
        %527 = vmatpush1.msra.mxu0 0.0
        %528 = vmatprep.mubr.f32.mxu0 0.0
        %529 = vmatmul.mubr.f32.gmra.mrb[0].mxu0 %v459
        %v530 = vpop.f32.mrb[0].mxu0
        %v531 = vadd.f32 %v447, %v530
        %v532 = vpop.f32.mrb[0].mxu0
        %v533 = vadd.f32 %v449, %v532
        %534 = vmatprep.mubr.f32.mxu0 0.0
        %535 = vmatmul.mubr.f32.gmra.mrb[0].mxu0 %v462
        %v536 = vpop.f32.mrb[0].mxu0
        %v537 = vadd.f32 %v453, %v536
        %v538 = vpop.f32.mrb[0].mxu0
        %v539 = vadd.f32 %v455, %v538
        %540 = vdwg.mxu0
        %v541 = vld [vmem:[%s277] sm:$0xff]
        %v542 = vld [vmem:[%s277 + $0x8] sm:$0xff]
        %v543 = vld [vmem:[%s277 + $0x10] sm:$0xff]
        %v544 = vld [vmem:[%s277 + $0x18] sm:$0xff]
        %v545 = vadd.f32 %v531, %v541
        %v546 = vadd.f32 %v533, %v542
        %v547 = vadd.f32 %v537, %v543
        %v548 = vadd.f32 %v539, %v544
        %549 = vst [vmem:[%s306] sm:$0xff] %v545
        %550 = vst [vmem:[%s306 + $0x8] sm:$0xff] %v546
        %551 = vst [vmem:[%s306 + $0x10] sm:$0xff] %v547
        %552 = vst [vmem:[%s306 + $0x18] sm:$0xff] %v548
        %s553 = sand.u32 %s143, 1
        %s554 = scalar_lea.sflag [#allocation4], %s553
        %s555 = sand.u32 %s143, 1
        %s556 = smul.addr %s555, 32
        %s557 = scalar_lea.vmem [#allocation9], %s556
        // Predicated region
        $region53: #{tpu_custom_call.1} parent=35 // pred_check
          %p558 = pneg %p153
        $region54: #{tpu_custom_call.1} parent=35 // pred_check_branch
          %560 = sbr.rel (%p558) target = $region56
        $region55: #{tpu_custom_call.1} parent=35 // pred_region
          %s561 = smul.u32 2, %s25
          %s563 = ssub.s32 512, 512
          %564 = vsyncadd %s554, %s563
          %s565 = smul.addr %s561, 2
          %s566 = smul.addr %s24, 4
          %s567 = sadd.s32 %s565, %s566
          %s568 = smul.addr %s567, 128
          %s569 = scalar_lea.hbm %s4, %s568
          %s570 = sshll.u32 %s557, 4
          %s571 = int_to_ptr.vmem [resolvable:$true] %s570
          %576 = dma.vmem_to_hbm [thread:$0]  %s571, 512, %s569, %s554, 256, 256, 16
        $region56: #{tpu_custom_call.1} parent=35 // pred_fallthru
          _
      $region36: #{tpu_custom_call.1} parent=5 // pred_fallthru
        _
      %p577 = scmp.le.s32.totalorder 2, %s15
      // Predicated region
      $region57: #{tpu_custom_call.1} parent=5 // pred_check
        %p578 = pneg %p577
      $region58: #{tpu_custom_call.1} parent=5 // pred_check_branch
        %580 = sbr.rel (%p578) target = $region60
      $region59: #{tpu_custom_call.1} parent=5 // pred_region
        %s581 = ssub.s32 %s15, 2
        // Predicated region
        $region61: #{tpu_custom_call.1} parent=59 // pred_check
          %p582 = pneg %p159
        $region62: #{tpu_custom_call.1} parent=59 // pred_check_branch
          %584 = sbr.rel (%p582) target = $region64
        $region63: #{tpu_custom_call.1} parent=59 // pred_region
          %s585 = sand.u32 %s144, 1
          %s586 = scalar_lea.sflag [#allocation4], %s585
          %s587 = sand.u32 %s144, 1
          %s588 = smul.addr %s587, 32
          %s589 = scalar_lea.vmem [#allocation9], %s588
          %590 = dma.done %s586, 512
        $region64: #{tpu_custom_call.1} parent=59 // pred_fallthru
          _
      $region60: #{tpu_custom_call.1} parent=5 // pred_fallthru
        _
    $region6: #{tpu_custom_call.1} parent=1 // loop_footer
      %s19 = sadd.s32 1, %s15
    $region7: #{tpu_custom_call.1} parent=1 // loop_footer_branch
      %14 = sbr.rel target = $region3
    $region8: #{tpu_custom_call.1} parent=1 // loop_exit
      _
    %591 = vsyncpa [#allocation3], 1
    %s592 = scalar_lea.sflag [#allocation3], 1
    %593 = vsyncpa %s592, 1
    %594 = vsyncpa [#allocation6], 1
    %595 = vsyncpa [#allocation4], 1
    %s596 = scalar_lea.sflag [#allocation4], 1
    %597 = vsyncpa %s596, 1

</llo_original>
